<compile_context>
chip_gen: v7x
topology: tpu7x:2x2x1
jax: 0.10.0
libtpu: 0.0.40
codegen_flags: <defaults>
</compile_context>

<pallas_src>
import functools

import jax
import jax.numpy as jnp
from jax.experimental import pallas as pl
from jax.experimental.pallas import tpu as pltpu


# ----------------------------- parameter helpers -----------------------------

def _fold_bn(w, b, gamma, beta, mean, var, eps=1e-5):
    """Fold an eval-mode BatchNorm into a preceding 1x1 conv.

    w: (C_in, C_out), b/gamma/beta/mean/var: (C_out,)
    """
    scale = gamma / jnp.sqrt(var + eps)
    w_f = w * scale[None, :]
    b_f = scale * (b - mean) + beta
    return w_f.astype(jnp.float32), b_f.astype(jnp.float32)


def init_params(key, F_g, F_l, F_out):
    ks = jax.random.split(key, 12)
    # W_g branch: Conv2d(F_g, F_out, 1) + BatchNorm2d(F_out)
    wg, bg = _fold_bn(
        0.1 * jax.random.normal(ks[0], (F_g, F_out), jnp.float32),
        0.1 * jax.random.normal(ks[1], (F_out,), jnp.float32),
        1.0 + 0.05 * jax.random.normal(ks[2], (F_out,), jnp.float32),
        0.05 * jax.random.normal(ks[3], (F_out,), jnp.float32),
        0.05 * jax.random.normal(ks[4], (F_out,), jnp.float32),
        1.0 + 0.1 * jax.random.uniform(ks[5], (F_out,), jnp.float32),
    )
    # W_x branch: Conv2d(F_l, F_out, 1) + BatchNorm2d(F_out)
    wx, bx = _fold_bn(
        0.1 * jax.random.normal(ks[6], (F_l, F_out), jnp.float32),
        0.1 * jax.random.normal(ks[7], (F_out,), jnp.float32),
        1.0 + 0.05 * jax.random.normal(ks[8], (F_out,), jnp.float32),
        0.05 * jax.random.normal(ks[9], (F_out,), jnp.float32),
        0.05 * jax.random.normal(ks[10], (F_out,), jnp.float32),
        1.0 + 0.1 * jax.random.uniform(ks[11], (F_out,), jnp.float32),
    )
    # psi branch: Conv2d(F_out, 1, 1) + BatchNorm2d(1) + Sigmoid
    kp = jax.random.split(jax.random.fold_in(key, 123), 6)
    wp, bp = _fold_bn(
        0.1 * jax.random.normal(kp[0], (F_out, 1), jnp.float32),
        0.1 * jax.random.normal(kp[1], (1,), jnp.float32),
        1.0 + 0.05 * jax.random.normal(kp[2], (1,), jnp.float32),
        0.05 * jax.random.normal(kp[3], (1,), jnp.float32),
        0.05 * jax.random.normal(kp[4], (1,), jnp.float32),
        1.0 + 0.1 * jax.random.uniform(kp[5], (1,), jnp.float32),
    )
    # Canonical fused layout for the pixels-on-lanes kernel.
    return {
        "w_t": jnp.concatenate([wg.T, wx.T], axis=1),  # (F_out, F_g+F_l) = [Wg^T | Wx^T]
        "b":   bg + bx,                                # (F_out,)   fused gating bias
        "wp":  wp.reshape(-1),                         # (F_out,)   psi weight
        "bp":  bp.reshape(1),                          # (1,)       psi bias
    }


# --------------------------------- kernels ------------------------------------

def _attention_kernel_mxu(g_ref, x_ref, w_ref, b_ref, wp_ref, bp_ref, o_ref):
    """Fused-contraction MXU path (use for real stages, F >= ~16)."""
    g = g_ref[0]                                    # (F_g, T)
    x = x_ref[0]                                    # (F_l, T)
    gx = jnp.concatenate([g, x], axis=0)            # (F_g+F_l, T): one MXU pass
    h = jnp.dot(w_ref[...], gx, preferred_element_type=jnp.float32) + b_ref[...]
    h = jnp.maximum(h, 0.0)                         # ReLU
    logits = jnp.dot(wp_ref[...], h,
                     preferred_element_type=jnp.float32) + bp_ref[...]   # (1, T)
    psi = jax.nn.sigmoid(logits)                    # (1, T) f32, lane-dense
    # Gating multiply in the activation dtype (sublane broadcast of psi).
    o_ref[0] = (x * psi.astype(x.dtype)).astype(o_ref.dtype)


def _attention_kernel_vpu(g_ref, x_ref, w_ref, b_ref, wp_ref, bp_ref, o_ref,
                          *, F_g, F_l, F_out):
    """Tiny-channel path: weights in SMEM, 1x1 convs as unrolled VPU FMAs.

    An (F_out, F_g+F_l) matmul with F ~ 4-8 uses <5% of the systolic array yet
    still pays full MXU push/drain latency, so run it on otherwise-idle VALU
    slots instead.  Accumulation is exact f32.
    """
    x_rows = [x_ref[0, i] for i in range(F_l)]             # native dtype, reused below
    gx_rows = ([g_ref[0, i].astype(jnp.float32) for i in range(F_g)]
               + [r.astype(jnp.float32) for r in x_rows])  # (F_g+F_l) rows of (T,)

    logits = bp_ref[0]
    for o in range(F_out):
        acc = b_ref[o]
        for i in range(F_g + F_l):
            acc = acc + w_ref[o, i] * gx_rows[i]
        logits = logits + wp_ref[o] * jnp.maximum(acc, 0.0)
    psi = jax.nn.sigmoid(logits).astype(o_ref.dtype)       # (T,), lane-dense

    for i in range(F_l):
        o_ref[0, i] = (x_rows[i] * psi).astype(o_ref.dtype)


# --------------------------------- wrapper -----------------------------------

@functools.partial(jax.jit, static_argnames=("pixel_tile", "force_mxu"))
def attention_block(g, x, params, *, pixel_tile=None, force_mxu=False):
    """g: (N, F_g, H, W), x: (N, F_l, H, W)  (NCHW, same spatial size)."""
    N, F_g, H, W = g.shape
    Nx, F_l, Hx, Wx = x.shape
    assert (N, H, W) == (Nx, Hx, Wx), "spatial/batch sizes of g and x must match"
    # TODO(synk): F.interpolate(..., mode='bilinear', align_corners=True) branch
    #             (used when g1/x1 spatial sizes differ) is not implemented.
    F_out, F_gl = params["w_t"].shape
    assert F_gl == F_g + F_l, "fused weight must be (F_out, F_g + F_l)"

    HW = H * W
    act_dtype = x.dtype
    itemsize = jnp.dtype(act_dtype).itemsize
    use_vpu = (not force_mxu) and (F_out * F_gl <= 128)

    # ---- tile sizing: the dominant lever is HBM bytes moved per grid step ----
    try:
        vmem_phys = int(pltpu.get_tpu_info().vmem_capacity_bytes)
    except Exception:
        vmem_phys = 64 << 20                     # safe lower bound (v7x per-TC)
    vmem_phys = min(max(vmem_phys, 32 << 20), 128 << 20)

    # Per-pixel VMEM: double-buffered g/x/out tiles + f32 intermediates.
    per_pixel = 2 * (F_g + 2 * F_l) * itemsize + (F_g + F_l + F_out) * 4 + 8
    # Constant-operand weights are still double-buffered by the pipeline.
    weight_bytes = 2 * (F_out * F_gl * itemsize + (2 * F_out + 2) * 4)
    budget = int(0.70 * vmem_phys) - weight_bytes

    if pixel_tile is not None:
        T = int(pixel_tile)
    else:
        T = max(128, budget // per_pixel)
        T = min(T, 64 * 1024)                    # diminishing returns past a few MiB/step
    if T >= HW:
        T = HW                                   # full-extent block: no ragged tail
    else:
        T = max(128, (T // 128) * 128)           # lane tile must be a multiple of 128

    # Keep >= 4 grid steps so both v7x TensorCores stay fed and the pipeline has depth.
    while N * pl.cdiv(HW, T) < 4 and T > 128:
        T = max(128, (T // 2) // 128 * 128)

    grid = (N, pl.cdiv(HW, T))

    # Pure views -- no transpose, no pad, no extra HBM passes.
    g3 = g.reshape(N, F_g, HW)
    x3 = x.reshape(N, F_l, HW)

    act_specs = [
        pl.BlockSpec((1, F_g, T), lambda n, t: (n, 0, t)),      # g pixels
        pl.BlockSpec((1, F_l, T), lambda n, t: (n, 0, t)),      # x pixels
    ]
    out_spec = pl.BlockSpec((1, F_l, T), lambda n, t: (n, 0, t))

    if use_vpu:
        kernel = functools.partial(_attention_kernel_vpu,
                                   F_g=F_g, F_l=F_l, F_out=F_out)
        smem = pl.BlockSpec(memory_space=pltpu.MemorySpace.SMEM)
        w_specs = [smem, smem, smem, smem]
        w_args = (params["w_t"].astype(jnp.float32),             # (F_out, F_g+F_l)
                  params["b"].astype(jnp.float32),                # (F_out,)
                  params["wp"].astype(jnp.float32),               # (F_out,)
                  params["bp"].astype(jnp.float32))               # (1,)
    else:
        kernel = _attention_kernel_mxu
        w_specs = [
            pl.BlockSpec((F_out, F_gl), lambda n, t: (0, 0)),     # [Wg^T | Wx^T]
            pl.BlockSpec((F_out, 1), lambda n, t: (0, 0)),        # bg+bx
            pl.BlockSpec((1, F_out), lambda n, t: (0, 0)),        # Wpsi^T
            pl.BlockSpec((1, 1), lambda n, t: (0, 0)),            # bpsi
        ]
        w_args = (params["w_t"].astype(act_dtype),
                  params["b"].astype(jnp.float32).reshape(F_out, 1),
                  params["wp"].astype(jnp.float32).reshape(1, F_out),
                  params["bp"].astype(jnp.float32).reshape(1, 1))

    # Explicit VMEM limit: don't rely on the 16/32 MiB scoped default.
    vmem_needed = per_pixel * T + weight_bytes + (4 << 20)
    vmem_limit = int(min(vmem_phys, max(vmem_needed, 32 << 20)))

    M = N * HW
    cost = pl.CostEstimate(
        flops=2 * M * F_gl * F_out + 2 * M * F_out + 2 * M * F_l,
        transcendentals=M,
        bytes_accessed=(g3.size + 2 * x3.size) * itemsize,
    )

    out = pl.pallas_call(
        kernel,
        out_shape=jax.ShapeDtypeStruct((N, F_l, HW), act_dtype),
        grid_spec=pltpu.PrefetchScalarGridSpec(
            num_scalar_prefetch=0,
            grid=grid,
            in_specs=act_specs + w_specs,
            out_specs=out_spec,
        ),
        compiler_params=pltpu.CompilerParams(
            dimension_semantics=("parallel", "parallel"),
            vmem_limit_bytes=vmem_limit,
        ),
        cost_estimate=cost,
    )(g3, x3, *w_args)

    return out.reshape(N, F_l, H, W)


# ------------------------------ pure-JAX reference ----------------------------

def attention_block_ref(g, x, params):
    N, F_g, H, W = g.shape
    F_l = x.shape[1]
    gm = g.reshape(N, F_g, -1).astype(jnp.float32)
    xm = x.reshape(N, F_l, -1).astype(jnp.float32)
    w = params["w_t"]                                    # (F_out, F_g+F_l)
    h = (jnp.einsum("og,ngp->nop", w[:, :F_g], gm)
         + jnp.einsum("ol,nlp->nop", w[:, F_g:], xm)
         + params["b"][None, :, None])
    h = jnp.maximum(h, 0.0)
    logits = (jnp.einsum("o,nop->np", params["wp"], h)[:, None, :]
              + params["bp"][None, :, None])
    psi = jax.nn.sigmoid(logits)                         # (N, 1, HW)
    out = xm * psi
    return out.reshape(N, F_l, H, W)                     # f32 reference


# ----------------------------------- main -------------------------------------

if __name__ == "__main__":
    key = jax.random.PRNGKey(0)
    kg, kx, kp = jax.random.split(key, 3)

    N, F_g, F_l, F_out, H, W = 2, 4, 4, 8, 16, 16
    g = jax.random.normal(kg, (N, F_g, H, W), jnp.float32)
    x = jax.random.normal(kx, (N, F_l, H, W), jnp.float32)
    params = init_params(kp, F_g, F_l, F_out)
    ref = attention_block_ref(g, x, params)

    # f32, auto-dispatch (tiny channels -> VPU/SMEM path).
    out = jax.block_until_ready(attention_block(g, x, params))
    assert out.shape == (N, F_l, H, W)
    assert jnp.allclose(out, ref, atol=1e-5, rtol=1e-5), "f32 (VPU path) mismatch"

    # f32, forced fused-MXU path (the one used for real U-Net channel counts).
    out_m = jax.block_until_ready(attention_block(g, x, params, force_mxu=True))
    assert jnp.allclose(out_m, ref, atol=1e-5, rtol=1e-5), "f32 (MXU path) mismatch"

    # bf16 activations in HBM (halves HBM traffic on this memory-bound op).
    g16, x16 = g.astype(jnp.bfloat16), x.astype(jnp.bfloat16)
    ref16 = attention_block_ref(g16, x16, params)
    out16 = jax.block_until_ready(attention_block(g16, x16, params))
    assert jnp.allclose(out16.astype(jnp.float32), ref16, atol=5e-2, rtol=5e-2), \
        "bf16 (VPU path) mismatch"
    out16m = jax.block_until_ready(attention_block(g16, x16, params, force_mxu=True))
    assert jnp.allclose(out16m.astype(jnp.float32), ref16, atol=5e-2, rtol=5e-2), \
        "bf16 (MXU path) mismatch"

    print("KERNEL_OK")
</pallas_src>

<mosaic_0001>
module attributes {stable_mosaic.version = 11 : i64} {
  func.func @_attention_kernel_vpu(%arg0: i32, %arg1: i32, %arg2: memref<1x4x128xf32, #tpu.memory_space<vmem>>, %arg3: memref<1x4x128xf32, #tpu.memory_space<vmem>>, %arg4: memref<8x8xf32, #tpu.memory_space<smem>>, %arg5: memref<8xf32, #tpu.memory_space<smem>>, %arg6: memref<8xf32, #tpu.memory_space<smem>>, %arg7: memref<1xf32, #tpu.memory_space<smem>>, %arg8: memref<1x4x128xf32, #tpu.memory_space<vmem>>) attributes {dimension_semantics = [#tpu.dimension_semantics<parallel>, #tpu.dimension_semantics<parallel>], iteration_bounds = array<i64: 2, 2>, scalar_prefetch = 0 : i64, scratch_operands = 0 : i64, tpu.core_type = #tpu.core_type<tc>, window_params = [{transform_indices = @transform_0, window_bounds = array<i64: 1, 4, 128>}, {transform_indices = @transform_1, window_bounds = array<i64: 1, 4, 128>}, {transform_indices = @transform_2, window_bounds = array<i64: 8, 8>}, {transform_indices = @transform_3, window_bounds = array<i64: 8>}, {transform_indices = @transform_4, window_bounds = array<i64: 8>}, {transform_indices = @transform_5, window_bounds = array<i64: 1>}, {transform_indices = @transform_6, window_bounds = array<i64: 1, 4, 128>}]} {
    %c0 = arith.constant 0 : index
    %c0_0 = arith.constant 0 : index
    %c0_1 = arith.constant 0 : index
    %0 = vector.load %arg3[%c0, %c0_0, %c0_1] : memref<1x4x128xf32, #tpu.memory_space<vmem>>, vector<1x1x128xf32>
    %1 = vector.shape_cast %0 : vector<1x1x128xf32> to vector<128xf32>
    %c0_2 = arith.constant 0 : index
    %c1 = arith.constant 1 : index
    %c0_3 = arith.constant 0 : index
    %2 = vector.load %arg3[%c0_2, %c1, %c0_3] : memref<1x4x128xf32, #tpu.memory_space<vmem>>, vector<1x1x128xf32>
    %3 = vector.shape_cast %2 : vector<1x1x128xf32> to vector<128xf32>
    %c0_4 = arith.constant 0 : index
    %c2 = arith.constant 2 : index
    %c0_5 = arith.constant 0 : index
    %4 = vector.load %arg3[%c0_4, %c2, %c0_5] : memref<1x4x128xf32, #tpu.memory_space<vmem>>, vector<1x1x128xf32>
    %5 = vector.shape_cast %4 : vector<1x1x128xf32> to vector<128xf32>
    %c0_6 = arith.constant 0 : index
    %c3 = arith.constant 3 : index
    %c0_7 = arith.constant 0 : index
    %6 = vector.load %arg3[%c0_6, %c3, %c0_7] : memref<1x4x128xf32, #tpu.memory_space<vmem>>, vector<1x1x128xf32>
    %7 = vector.shape_cast %6 : vector<1x1x128xf32> to vector<128xf32>
    %c0_8 = arith.constant 0 : index
    %c0_9 = arith.constant 0 : index
    %c0_10 = arith.constant 0 : index
    %8 = vector.load %arg2[%c0_8, %c0_9, %c0_10] : memref<1x4x128xf32, #tpu.memory_space<vmem>>, vector<1x1x128xf32>
    %9 = vector.shape_cast %8 : vector<1x1x128xf32> to vector<128xf32>
    %c0_11 = arith.constant 0 : index
    %c1_12 = arith.constant 1 : index
    %c0_13 = arith.constant 0 : index
    %10 = vector.load %arg2[%c0_11, %c1_12, %c0_13] : memref<1x4x128xf32, #tpu.memory_space<vmem>>, vector<1x1x128xf32>
    %11 = vector.shape_cast %10 : vector<1x1x128xf32> to vector<128xf32>
    %c0_14 = arith.constant 0 : index
    %c2_15 = arith.constant 2 : index
    %c0_16 = arith.constant 0 : index
    %12 = vector.load %arg2[%c0_14, %c2_15, %c0_16] : memref<1x4x128xf32, #tpu.memory_space<vmem>>, vector<1x1x128xf32>
    %13 = vector.shape_cast %12 : vector<1x1x128xf32> to vector<128xf32>
    %c0_17 = arith.constant 0 : index
    %c3_18 = arith.constant 3 : index
    %c0_19 = arith.constant 0 : index
    %14 = vector.load %arg2[%c0_17, %c3_18, %c0_19] : memref<1x4x128xf32, #tpu.memory_space<vmem>>, vector<1x1x128xf32>
    %15 = vector.shape_cast %14 : vector<1x1x128xf32> to vector<128xf32>
    %c0_20 = arith.constant 0 : index
    %16 = memref.load %arg7[%c0_20] : memref<1xf32, #tpu.memory_space<smem>>
    %c0_21 = arith.constant 0 : index
    %17 = memref.load %arg5[%c0_21] : memref<8xf32, #tpu.memory_space<smem>>
    %c0_22 = arith.constant 0 : index
    %c0_23 = arith.constant 0 : index
    %18 = memref.load %arg4[%c0_22, %c0_23] : memref<8x8xf32, #tpu.memory_space<smem>>
    %19 = vector.broadcast %18 : f32 to vector<128xf32>
    %20 = arith.mulf %19, %9 : vector<128xf32>
    %21 = vector.broadcast %17 : f32 to vector<128xf32>
    %22 = arith.addf %21, %20 : vector<128xf32>
    %c0_24 = arith.constant 0 : index
    %c1_25 = arith.constant 1 : index
    %23 = memref.load %arg4[%c0_24, %c1_25] : memref<8x8xf32, #tpu.memory_space<smem>>
    %24 = vector.broadcast %23 : f32 to vector<128xf32>
    %25 = arith.mulf %24, %11 : vector<128xf32>
    %26 = arith.addf %22, %25 : vector<128xf32>
    %c0_26 = arith.constant 0 : index
    %c2_27 = arith.constant 2 : index
    %27 = memref.load %arg4[%c0_26, %c2_27] : memref<8x8xf32, #tpu.memory_space<smem>>
    %28 = vector.broadcast %27 : f32 to vector<128xf32>
    %29 = arith.mulf %28, %13 : vector<128xf32>
    %30 = arith.addf %26, %29 : vector<128xf32>
    %c0_28 = arith.constant 0 : index
    %c3_29 = arith.constant 3 : index
    %31 = memref.load %arg4[%c0_28, %c3_29] : memref<8x8xf32, #tpu.memory_space<smem>>
    %32 = vector.broadcast %31 : f32 to vector<128xf32>
    %33 = arith.mulf %32, %15 : vector<128xf32>
    %34 = arith.addf %30, %33 : vector<128xf32>
    %c0_30 = arith.constant 0 : index
    %c4 = arith.constant 4 : index
    %35 = memref.load %arg4[%c0_30, %c4] : memref<8x8xf32, #tpu.memory_space<smem>>
    %36 = vector.broadcast %35 : f32 to vector<128xf32>
    %37 = arith.mulf %36, %1 : vector<128xf32>
    %38 = arith.addf %34, %37 : vector<128xf32>
    %c0_31 = arith.constant 0 : index
    %c5 = arith.constant 5 : index
    %39 = memref.load %arg4[%c0_31, %c5] : memref<8x8xf32, #tpu.memory_space<smem>>
    %40 = vector.broadcast %39 : f32 to vector<128xf32>
    %41 = arith.mulf %40, %3 : vector<128xf32>
    %42 = arith.addf %38, %41 : vector<128xf32>
    %c0_32 = arith.constant 0 : index
    %c6 = arith.constant 6 : index
    %43 = memref.load %arg4[%c0_32, %c6] : memref<8x8xf32, #tpu.memory_space<smem>>
    %44 = vector.broadcast %43 : f32 to vector<128xf32>
    %45 = arith.mulf %44, %5 : vector<128xf32>
    %46 = arith.addf %42, %45 : vector<128xf32>
    %c0_33 = arith.constant 0 : index
    %c7 = arith.constant 7 : index
    %47 = memref.load %arg4[%c0_33, %c7] : memref<8x8xf32, #tpu.memory_space<smem>>
    %48 = vector.broadcast %47 : f32 to vector<128xf32>
    %49 = arith.mulf %48, %7 : vector<128xf32>
    %50 = arith.addf %46, %49 : vector<128xf32>
    %c0_34 = arith.constant 0 : index
    %51 = memref.load %arg6[%c0_34] : memref<8xf32, #tpu.memory_space<smem>>
    %cst = arith.constant 0.000000e+00 : f32
    %52 = vector.broadcast %cst : f32 to vector<128xf32>
    %53 = arith.maximumf %50, %52 : vector<128xf32>
    %54 = vector.broadcast %51 : f32 to vector<128xf32>
    %55 = arith.mulf %54, %53 : vector<128xf32>
    %56 = vector.broadcast %16 : f32 to vector<128xf32>
    %57 = arith.addf %56, %55 : vector<128xf32>
    %c1_35 = arith.constant 1 : index
    %58 = memref.load %arg5[%c1_35] : memref<8xf32, #tpu.memory_space<smem>>
    %c1_36 = arith.constant 1 : index
    %c0_37 = arith.constant 0 : index
    %59 = memref.load %arg4[%c1_36, %c0_37] : memref<8x8xf32, #tpu.memory_space<smem>>
    %60 = vector.broadcast %59 : f32 to vector<128xf32>
    %61 = arith.mulf %60, %9 : vector<128xf32>
    %62 = vector.broadcast %58 : f32 to vector<128xf32>
    %63 = arith.addf %62, %61 : vector<128xf32>
    %c1_38 = arith.constant 1 : index
    %c1_39 = arith.constant 1 : index
    %64 = memref.load %arg4[%c1_38, %c1_39] : memref<8x8xf32, #tpu.memory_space<smem>>
    %65 = vector.broadcast %64 : f32 to vector<128xf32>
    %66 = arith.mulf %65, %11 : vector<128xf32>
    %67 = arith.addf %63, %66 : vector<128xf32>
    %c1_40 = arith.constant 1 : index
    %c2_41 = arith.constant 2 : index
    %68 = memref.load %arg4[%c1_40, %c2_41] : memref<8x8xf32, #tpu.memory_space<smem>>
    %69 = vector.broadcast %68 : f32 to vector<128xf32>
    %70 = arith.mulf %69, %13 : vector<128xf32>
    %71 = arith.addf %67, %70 : vector<128xf32>
    %c1_42 = arith.constant 1 : index
    %c3_43 = arith.constant 3 : index
    %72 = memref.load %arg4[%c1_42, %c3_43] : memref<8x8xf32, #tpu.memory_space<smem>>
    %73 = vector.broadcast %72 : f32 to vector<128xf32>
    %74 = arith.mulf %73, %15 : vector<128xf32>
    %75 = arith.addf %71, %74 : vector<128xf32>
    %c1_44 = arith.constant 1 : index
    %c4_45 = arith.constant 4 : index
    %76 = memref.load %arg4[%c1_44, %c4_45] : memref<8x8xf32, #tpu.memory_space<smem>>
    %77 = vector.broadcast %76 : f32 to vector<128xf32>
    %78 = arith.mulf %77, %1 : vector<128xf32>
    %79 = arith.addf %75, %78 : vector<128xf32>
    %c1_46 = arith.constant 1 : index
    %c5_47 = arith.constant 5 : index
    %80 = memref.load %arg4[%c1_46, %c5_47] : memref<8x8xf32, #tpu.memory_space<smem>>
    %81 = vector.broadcast %80 : f32 to vector<128xf32>
    %82 = arith.mulf %81, %3 : vector<128xf32>
    %83 = arith.addf %79, %82 : vector<128xf32>
    %c1_48 = arith.constant 1 : index
    %c6_49 = arith.constant 6 : index
    %84 = memref.load %arg4[%c1_48, %c6_49] : memref<8x8xf32, #tpu.memory_space<smem>>
    %85 = vector.broadcast %84 : f32 to vector<128xf32>
    %86 = arith.mulf %85, %5 : vector<128xf32>
    %87 = arith.addf %83, %86 : vector<128xf32>
    %c1_50 = arith.constant 1 : index
    %c7_51 = arith.constant 7 : index
    %88 = memref.load %arg4[%c1_50, %c7_51] : memref<8x8xf32, #tpu.memory_space<smem>>
    %89 = vector.broadcast %88 : f32 to vector<128xf32>
    %90 = arith.mulf %89, %7 : vector<128xf32>
    %91 = arith.addf %87, %90 : vector<128xf32>
    %c1_52 = arith.constant 1 : index
    %92 = memref.load %arg6[%c1_52] : memref<8xf32, #tpu.memory_space<smem>>
    %cst_53 = arith.constant 0.000000e+00 : f32
    %93 = vector.broadcast %cst_53 : f32 to vector<128xf32>
    %94 = arith.maximumf %91, %93 : vector<128xf32>
    %95 = vector.broadcast %92 : f32 to vector<128xf32>
    %96 = arith.mulf %95, %94 : vector<128xf32>
    %97 = arith.addf %57, %96 : vector<128xf32>
    %c2_54 = arith.constant 2 : index
    %98 = memref.load %arg5[%c2_54] : memref<8xf32, #tpu.memory_space<smem>>
    %c2_55 = arith.constant 2 : index
    %c0_56 = arith.constant 0 : index
    %99 = memref.load %arg4[%c2_55, %c0_56] : memref<8x8xf32, #tpu.memory_space<smem>>
    %100 = vector.broadcast %99 : f32 to vector<128xf32>
    %101 = arith.mulf %100, %9 : vector<128xf32>
    %102 = vector.broadcast %98 : f32 to vector<128xf32>
    %103 = arith.addf %102, %101 : vector<128xf32>
    %c2_57 = arith.constant 2 : index
    %c1_58 = arith.constant 1 : index
    %104 = memref.load %arg4[%c2_57, %c1_58] : memref<8x8xf32, #tpu.memory_space<smem>>
    %105 = vector.broadcast %104 : f32 to vector<128xf32>
    %106 = arith.mulf %105, %11 : vector<128xf32>
    %107 = arith.addf %103, %106 : vector<128xf32>
    %c2_59 = arith.constant 2 : index
    %c2_60 = arith.constant 2 : index
    %108 = memref.load %arg4[%c2_59, %c2_60] : memref<8x8xf32, #tpu.memory_space<smem>>
    %109 = vector.broadcast %108 : f32 to vector<128xf32>
    %110 = arith.mulf %109, %13 : vector<128xf32>
    %111 = arith.addf %107, %110 : vector<128xf32>
    %c2_61 = arith.constant 2 : index
    %c3_62 = arith.constant 3 : index
    %112 = memref.load %arg4[%c2_61, %c3_62] : memref<8x8xf32, #tpu.memory_space<smem>>
    %113 = vector.broadcast %112 : f32 to vector<128xf32>
    %114 = arith.mulf %113, %15 : vector<128xf32>
    %115 = arith.addf %111, %114 : vector<128xf32>
    %c2_63 = arith.constant 2 : index
    %c4_64 = arith.constant 4 : index
    %116 = memref.load %arg4[%c2_63, %c4_64] : memref<8x8xf32, #tpu.memory_space<smem>>
    %117 = vector.broadcast %116 : f32 to vector<128xf32>
    %118 = arith.mulf %117, %1 : vector<128xf32>
    %119 = arith.addf %115, %118 : vector<128xf32>
    %c2_65 = arith.constant 2 : index
    %c5_66 = arith.constant 5 : index
    %120 = memref.load %arg4[%c2_65, %c5_66] : memref<8x8xf32, #tpu.memory_space<smem>>
    %121 = vector.broadcast %120 : f32 to vector<128xf32>
    %122 = arith.mulf %121, %3 : vector<128xf32>
    %123 = arith.addf %119, %122 : vector<128xf32>
    %c2_67 = arith.constant 2 : index
    %c6_68 = arith.constant 6 : index
    %124 = memref.load %arg4[%c2_67, %c6_68] : memref<8x8xf32, #tpu.memory_space<smem>>
    %125 = vector.broadcast %124 : f32 to vector<128xf32>
    %126 = arith.mulf %125, %5 : vector<128xf32>
    %127 = arith.addf %123, %126 : vector<128xf32>
    %c2_69 = arith.constant 2 : index
    %c7_70 = arith.constant 7 : index
    %128 = memref.load %arg4[%c2_69, %c7_70] : memref<8x8xf32, #tpu.memory_space<smem>>
    %129 = vector.broadcast %128 : f32 to vector<128xf32>
    %130 = arith.mulf %129, %7 : vector<128xf32>
    %131 = arith.addf %127, %130 : vector<128xf32>
    %c2_71 = arith.constant 2 : index
    %132 = memref.load %arg6[%c2_71] : memref<8xf32, #tpu.memory_space<smem>>
    %cst_72 = arith.constant 0.000000e+00 : f32
    %133 = vector.broadcast %cst_72 : f32 to vector<128xf32>
    %134 = arith.maximumf %131, %133 : vector<128xf32>
    %135 = vector.broadcast %132 : f32 to vector<128xf32>
    %136 = arith.mulf %135, %134 : vector<128xf32>
    %137 = arith.addf %97, %136 : vector<128xf32>
    %c3_73 = arith.constant 3 : index
    %138 = memref.load %arg5[%c3_73] : memref<8xf32, #tpu.memory_space<smem>>
    %c3_74 = arith.constant 3 : index
    %c0_75 = arith.constant 0 : index
    %139 = memref.load %arg4[%c3_74, %c0_75] : memref<8x8xf32, #tpu.memory_space<smem>>
    %140 = vector.broadcast %139 : f32 to vector<128xf32>
    %141 = arith.mulf %140, %9 : vector<128xf32>
    %142 = vector.broadcast %138 : f32 to vector<128xf32>
    %143 = arith.addf %142, %141 : vector<128xf32>
    %c3_76 = arith.constant 3 : index
    %c1_77 = arith.constant 1 : index
    %144 = memref.load %arg4[%c3_76, %c1_77] : memref<8x8xf32, #tpu.memory_space<smem>>
    %145 = vector.broadcast %144 : f32 to vector<128xf32>
    %146 = arith.mulf %145, %11 : vector<128xf32>
    %147 = arith.addf %143, %146 : vector<128xf32>
    %c3_78 = arith.constant 3 : index
    %c2_79 = arith.constant 2 : index
    %148 = memref.load %arg4[%c3_78, %c2_79] : memref<8x8xf32, #tpu.memory_space<smem>>
    %149 = vector.broadcast %148 : f32 to vector<128xf32>
    %150 = arith.mulf %149, %13 : vector<128xf32>
    %151 = arith.addf %147, %150 : vector<128xf32>
    %c3_80 = arith.constant 3 : index
    %c3_81 = arith.constant 3 : index
    %152 = memref.load %arg4[%c3_80, %c3_81] : memref<8x8xf32, #tpu.memory_space<smem>>
    %153 = vector.broadcast %152 : f32 to vector<128xf32>
    %154 = arith.mulf %153, %15 : vector<128xf32>
    %155 = arith.addf %151, %154 : vector<128xf32>
    %c3_82 = arith.constant 3 : index
    %c4_83 = arith.constant 4 : index
    %156 = memref.load %arg4[%c3_82, %c4_83] : memref<8x8xf32, #tpu.memory_space<smem>>
    %157 = vector.broadcast %156 : f32 to vector<128xf32>
    %158 = arith.mulf %157, %1 : vector<128xf32>
    %159 = arith.addf %155, %158 : vector<128xf32>
    %c3_84 = arith.constant 3 : index
    %c5_85 = arith.constant 5 : index
    %160 = memref.load %arg4[%c3_84, %c5_85] : memref<8x8xf32, #tpu.memory_space<smem>>
    %161 = vector.broadcast %160 : f32 to vector<128xf32>
    %162 = arith.mulf %161, %3 : vector<128xf32>
    %163 = arith.addf %159, %162 : vector<128xf32>
    %c3_86 = arith.constant 3 : index
    %c6_87 = arith.constant 6 : index
    %164 = memref.load %arg4[%c3_86, %c6_87] : memref<8x8xf32, #tpu.memory_space<smem>>
    %165 = vector.broadcast %164 : f32 to vector<128xf32>
    %166 = arith.mulf %165, %5 : vector<128xf32>
    %167 = arith.addf %163, %166 : vector<128xf32>
    %c3_88 = arith.constant 3 : index
    %c7_89 = arith.constant 7 : index
    %168 = memref.load %arg4[%c3_88, %c7_89] : memref<8x8xf32, #tpu.memory_space<smem>>
    %169 = vector.broadcast %168 : f32 to vector<128xf32>
    %170 = arith.mulf %169, %7 : vector<128xf32>
    %171 = arith.addf %167, %170 : vector<128xf32>
    %c3_90 = arith.constant 3 : index
    %172 = memref.load %arg6[%c3_90] : memref<8xf32, #tpu.memory_space<smem>>
    %cst_91 = arith.constant 0.000000e+00 : f32
    %173 = vector.broadcast %cst_91 : f32 to vector<128xf32>
    %174 = arith.maximumf %171, %173 : vector<128xf32>
    %175 = vector.broadcast %172 : f32 to vector<128xf32>
    %176 = arith.mulf %175, %174 : vector<128xf32>
    %177 = arith.addf %137, %176 : vector<128xf32>
    %c4_92 = arith.constant 4 : index
    %178 = memref.load %arg5[%c4_92] : memref<8xf32, #tpu.memory_space<smem>>
    %c4_93 = arith.constant 4 : index
    %c0_94 = arith.constant 0 : index
    %179 = memref.load %arg4[%c4_93, %c0_94] : memref<8x8xf32, #tpu.memory_space<smem>>
    %180 = vector.broadcast %179 : f32 to vector<128xf32>
    %181 = arith.mulf %180, %9 : vector<128xf32>
    %182 = vector.broadcast %178 : f32 to vector<128xf32>
    %183 = arith.addf %182, %181 : vector<128xf32>
    %c4_95 = arith.constant 4 : index
    %c1_96 = arith.constant 1 : index
    %184 = memref.load %arg4[%c4_95, %c1_96] : memref<8x8xf32, #tpu.memory_space<smem>>
    %185 = vector.broadcast %184 : f32 to vector<128xf32>
    %186 = arith.mulf %185, %11 : vector<128xf32>
    %187 = arith.addf %183, %186 : vector<128xf32>
    %c4_97 = arith.constant 4 : index
    %c2_98 = arith.constant 2 : index
    %188 = memref.load %arg4[%c4_97, %c2_98] : memref<8x8xf32, #tpu.memory_space<smem>>
    %189 = vector.broadcast %188 : f32 to vector<128xf32>
    %190 = arith.mulf %189, %13 : vector<128xf32>
    %191 = arith.addf %187, %190 : vector<128xf32>
    %c4_99 = arith.constant 4 : index
    %c3_100 = arith.constant 3 : index
    %192 = memref.load %arg4[%c4_99, %c3_100] : memref<8x8xf32, #tpu.memory_space<smem>>
    %193 = vector.broadcast %192 : f32 to vector<128xf32>
    %194 = arith.mulf %193, %15 : vector<128xf32>
    %195 = arith.addf %191, %194 : vector<128xf32>
    %c4_101 = arith.constant 4 : index
    %c4_102 = arith.constant 4 : index
    %196 = memref.load %arg4[%c4_101, %c4_102] : memref<8x8xf32, #tpu.memory_space<smem>>
    %197 = vector.broadcast %196 : f32 to vector<128xf32>
    %198 = arith.mulf %197, %1 : vector<128xf32>
    %199 = arith.addf %195, %198 : vector<128xf32>
    %c4_103 = arith.constant 4 : index
    %c5_104 = arith.constant 5 : index
    %200 = memref.load %arg4[%c4_103, %c5_104] : memref<8x8xf32, #tpu.memory_space<smem>>
    %201 = vector.broadcast %200 : f32 to vector<128xf32>
    %202 = arith.mulf %201, %3 : vector<128xf32>
    %203 = arith.addf %199, %202 : vector<128xf32>
    %c4_105 = arith.constant 4 : index
    %c6_106 = arith.constant 6 : index
    %204 = memref.load %arg4[%c4_105, %c6_106] : memref<8x8xf32, #tpu.memory_space<smem>>
    %205 = vector.broadcast %204 : f32 to vector<128xf32>
    %206 = arith.mulf %205, %5 : vector<128xf32>
    %207 = arith.addf %203, %206 : vector<128xf32>
    %c4_107 = arith.constant 4 : index
    %c7_108 = arith.constant 7 : index
    %208 = memref.load %arg4[%c4_107, %c7_108] : memref<8x8xf32, #tpu.memory_space<smem>>
    %209 = vector.broadcast %208 : f32 to vector<128xf32>
    %210 = arith.mulf %209, %7 : vector<128xf32>
    %211 = arith.addf %207, %210 : vector<128xf32>
    %c4_109 = arith.constant 4 : index
    %212 = memref.load %arg6[%c4_109] : memref<8xf32, #tpu.memory_space<smem>>
    %cst_110 = arith.constant 0.000000e+00 : f32
    %213 = vector.broadcast %cst_110 : f32 to vector<128xf32>
    %214 = arith.maximumf %211, %213 : vector<128xf32>
    %215 = vector.broadcast %212 : f32 to vector<128xf32>
    %216 = arith.mulf %215, %214 : vector<128xf32>
    %217 = arith.addf %177, %216 : vector<128xf32>
    %c5_111 = arith.constant 5 : index
    %218 = memref.load %arg5[%c5_111] : memref<8xf32, #tpu.memory_space<smem>>
    %c5_112 = arith.constant 5 : index
    %c0_113 = arith.constant 0 : index
    %219 = memref.load %arg4[%c5_112, %c0_113] : memref<8x8xf32, #tpu.memory_space<smem>>
    %220 = vector.broadcast %219 : f32 to vector<128xf32>
    %221 = arith.mulf %220, %9 : vector<128xf32>
    %222 = vector.broadcast %218 : f32 to vector<128xf32>
    %223 = arith.addf %222, %221 : vector<128xf32>
    %c5_114 = arith.constant 5 : index
    %c1_115 = arith.constant 1 : index
    %224 = memref.load %arg4[%c5_114, %c1_115] : memref<8x8xf32, #tpu.memory_space<smem>>
    %225 = vector.broadcast %224 : f32 to vector<128xf32>
    %226 = arith.mulf %225, %11 : vector<128xf32>
    %227 = arith.addf %223, %226 : vector<128xf32>
    %c5_116 = arith.constant 5 : index
    %c2_117 = arith.constant 2 : index
    %228 = memref.load %arg4[%c5_116, %c2_117] : memref<8x8xf32, #tpu.memory_space<smem>>
    %229 = vector.broadcast %228 : f32 to vector<128xf32>
    %230 = arith.mulf %229, %13 : vector<128xf32>
    %231 = arith.addf %227, %230 : vector<128xf32>
    %c5_118 = arith.constant 5 : index
    %c3_119 = arith.constant 3 : index
    %232 = memref.load %arg4[%c5_118, %c3_119] : memref<8x8xf32, #tpu.memory_space<smem>>
    %233 = vector.broadcast %232 : f32 to vector<128xf32>
    %234 = arith.mulf %233, %15 : vector<128xf32>
    %235 = arith.addf %231, %234 : vector<128xf32>
    %c5_120 = arith.constant 5 : index
    %c4_121 = arith.constant 4 : index
    %236 = memref.load %arg4[%c5_120, %c4_121] : memref<8x8xf32, #tpu.memory_space<smem>>
    %237 = vector.broadcast %236 : f32 to vector<128xf32>
    %238 = arith.mulf %237, %1 : vector<128xf32>
    %239 = arith.addf %235, %238 : vector<128xf32>
    %c5_122 = arith.constant 5 : index
    %c5_123 = arith.constant 5 : index
    %240 = memref.load %arg4[%c5_122, %c5_123] : memref<8x8xf32, #tpu.memory_space<smem>>
    %241 = vector.broadcast %240 : f32 to vector<128xf32>
    %242 = arith.mulf %241, %3 : vector<128xf32>
    %243 = arith.addf %239, %242 : vector<128xf32>
    %c5_124 = arith.constant 5 : index
    %c6_125 = arith.constant 6 : index
    %244 = memref.load %arg4[%c5_124, %c6_125] : memref<8x8xf32, #tpu.memory_space<smem>>
    %245 = vector.broadcast %244 : f32 to vector<128xf32>
    %246 = arith.mulf %245, %5 : vector<128xf32>
    %247 = arith.addf %243, %246 : vector<128xf32>
    %c5_126 = arith.constant 5 : index
    %c7_127 = arith.constant 7 : index
    %248 = memref.load %arg4[%c5_126, %c7_127] : memref<8x8xf32, #tpu.memory_space<smem>>
    %249 = vector.broadcast %248 : f32 to vector<128xf32>
    %250 = arith.mulf %249, %7 : vector<128xf32>
    %251 = arith.addf %247, %250 : vector<128xf32>
    %c5_128 = arith.constant 5 : index
    %252 = memref.load %arg6[%c5_128] : memref<8xf32, #tpu.memory_space<smem>>
    %cst_129 = arith.constant 0.000000e+00 : f32
    %253 = vector.broadcast %cst_129 : f32 to vector<128xf32>
    %254 = arith.maximumf %251, %253 : vector<128xf32>
    %255 = vector.broadcast %252 : f32 to vector<128xf32>
    %256 = arith.mulf %255, %254 : vector<128xf32>
    %257 = arith.addf %217, %256 : vector<128xf32>
    %c6_130 = arith.constant 6 : index
    %258 = memref.load %arg5[%c6_130] : memref<8xf32, #tpu.memory_space<smem>>
    %c6_131 = arith.constant 6 : index
    %c0_132 = arith.constant 0 : index
    %259 = memref.load %arg4[%c6_131, %c0_132] : memref<8x8xf32, #tpu.memory_space<smem>>
    %260 = vector.broadcast %259 : f32 to vector<128xf32>
    %261 = arith.mulf %260, %9 : vector<128xf32>
    %262 = vector.broadcast %258 : f32 to vector<128xf32>
    %263 = arith.addf %262, %261 : vector<128xf32>
    %c6_133 = arith.constant 6 : index
    %c1_134 = arith.constant 1 : index
    %264 = memref.load %arg4[%c6_133, %c1_134] : memref<8x8xf32, #tpu.memory_space<smem>>
    %265 = vector.broadcast %264 : f32 to vector<128xf32>
    %266 = arith.mulf %265, %11 : vector<128xf32>
    %267 = arith.addf %263, %266 : vector<128xf32>
    %c6_135 = arith.constant 6 : index
    %c2_136 = arith.constant 2 : index
    %268 = memref.load %arg4[%c6_135, %c2_136] : memref<8x8xf32, #tpu.memory_space<smem>>
    %269 = vector.broadcast %268 : f32 to vector<128xf32>
    %270 = arith.mulf %269, %13 : vector<128xf32>
    %271 = arith.addf %267, %270 : vector<128xf32>
    %c6_137 = arith.constant 6 : index
    %c3_138 = arith.constant 3 : index
    %272 = memref.load %arg4[%c6_137, %c3_138] : memref<8x8xf32, #tpu.memory_space<smem>>
    %273 = vector.broadcast %272 : f32 to vector<128xf32>
    %274 = arith.mulf %273, %15 : vector<128xf32>
    %275 = arith.addf %271, %274 : vector<128xf32>
    %c6_139 = arith.constant 6 : index
    %c4_140 = arith.constant 4 : index
    %276 = memref.load %arg4[%c6_139, %c4_140] : memref<8x8xf32, #tpu.memory_space<smem>>
    %277 = vector.broadcast %276 : f32 to vector<128xf32>
    %278 = arith.mulf %277, %1 : vector<128xf32>
    %279 = arith.addf %275, %278 : vector<128xf32>
    %c6_141 = arith.constant 6 : index
    %c5_142 = arith.constant 5 : index
    %280 = memref.load %arg4[%c6_141, %c5_142] : memref<8x8xf32, #tpu.memory_space<smem>>
    %281 = vector.broadcast %280 : f32 to vector<128xf32>
    %282 = arith.mulf %281, %3 : vector<128xf32>
    %283 = arith.addf %279, %282 : vector<128xf32>
    %c6_143 = arith.constant 6 : index
    %c6_144 = arith.constant 6 : index
    %284 = memref.load %arg4[%c6_143, %c6_144] : memref<8x8xf32, #tpu.memory_space<smem>>
    %285 = vector.broadcast %284 : f32 to vector<128xf32>
    %286 = arith.mulf %285, %5 : vector<128xf32>
    %287 = arith.addf %283, %286 : vector<128xf32>
    %c6_145 = arith.constant 6 : index
    %c7_146 = arith.constant 7 : index
    %288 = memref.load %arg4[%c6_145, %c7_146] : memref<8x8xf32, #tpu.memory_space<smem>>
    %289 = vector.broadcast %288 : f32 to vector<128xf32>
    %290 = arith.mulf %289, %7 : vector<128xf32>
    %291 = arith.addf %287, %290 : vector<128xf32>
    %c6_147 = arith.constant 6 : index
    %292 = memref.load %arg6[%c6_147] : memref<8xf32, #tpu.memory_space<smem>>
    %cst_148 = arith.constant 0.000000e+00 : f32
    %293 = vector.broadcast %cst_148 : f32 to vector<128xf32>
    %294 = arith.maximumf %291, %293 : vector<128xf32>
    %295 = vector.broadcast %292 : f32 to vector<128xf32>
    %296 = arith.mulf %295, %294 : vector<128xf32>
    %297 = arith.addf %257, %296 : vector<128xf32>
    %c7_149 = arith.constant 7 : index
    %298 = memref.load %arg5[%c7_149] : memref<8xf32, #tpu.memory_space<smem>>
    %c7_150 = arith.constant 7 : index
    %c0_151 = arith.constant 0 : index
    %299 = memref.load %arg4[%c7_150, %c0_151] : memref<8x8xf32, #tpu.memory_space<smem>>
    %300 = vector.broadcast %299 : f32 to vector<128xf32>
    %301 = arith.mulf %300, %9 : vector<128xf32>
    %302 = vector.broadcast %298 : f32 to vector<128xf32>
    %303 = arith.addf %302, %301 : vector<128xf32>
    %c7_152 = arith.constant 7 : index
    %c1_153 = arith.constant 1 : index
    %304 = memref.load %arg4[%c7_152, %c1_153] : memref<8x8xf32, #tpu.memory_space<smem>>
    %305 = vector.broadcast %304 : f32 to vector<128xf32>
    %306 = arith.mulf %305, %11 : vector<128xf32>
    %307 = arith.addf %303, %306 : vector<128xf32>
    %c7_154 = arith.constant 7 : index
    %c2_155 = arith.constant 2 : index
    %308 = memref.load %arg4[%c7_154, %c2_155] : memref<8x8xf32, #tpu.memory_space<smem>>
    %309 = vector.broadcast %308 : f32 to vector<128xf32>
    %310 = arith.mulf %309, %13 : vector<128xf32>
    %311 = arith.addf %307, %310 : vector<128xf32>
    %c7_156 = arith.constant 7 : index
    %c3_157 = arith.constant 3 : index
    %312 = memref.load %arg4[%c7_156, %c3_157] : memref<8x8xf32, #tpu.memory_space<smem>>
    %313 = vector.broadcast %312 : f32 to vector<128xf32>
    %314 = arith.mulf %313, %15 : vector<128xf32>
    %315 = arith.addf %311, %314 : vector<128xf32>
    %c7_158 = arith.constant 7 : index
    %c4_159 = arith.constant 4 : index
    %316 = memref.load %arg4[%c7_158, %c4_159] : memref<8x8xf32, #tpu.memory_space<smem>>
    %317 = vector.broadcast %316 : f32 to vector<128xf32>
    %318 = arith.mulf %317, %1 : vector<128xf32>
    %319 = arith.addf %315, %318 : vector<128xf32>
    %c7_160 = arith.constant 7 : index
    %c5_161 = arith.constant 5 : index
    %320 = memref.load %arg4[%c7_160, %c5_161] : memref<8x8xf32, #tpu.memory_space<smem>>
    %321 = vector.broadcast %320 : f32 to vector<128xf32>
    %322 = arith.mulf %321, %3 : vector<128xf32>
    %323 = arith.addf %319, %322 : vector<128xf32>
    %c7_162 = arith.constant 7 : index
    %c6_163 = arith.constant 6 : index
    %324 = memref.load %arg4[%c7_162, %c6_163] : memref<8x8xf32, #tpu.memory_space<smem>>
    %325 = vector.broadcast %324 : f32 to vector<128xf32>
    %326 = arith.mulf %325, %5 : vector<128xf32>
    %327 = arith.addf %323, %326 : vector<128xf32>
    %c7_164 = arith.constant 7 : index
    %c7_165 = arith.constant 7 : index
    %328 = memref.load %arg4[%c7_164, %c7_165] : memref<8x8xf32, #tpu.memory_space<smem>>
    %329 = vector.broadcast %328 : f32 to vector<128xf32>
    %330 = arith.mulf %329, %7 : vector<128xf32>
    %331 = arith.addf %327, %330 : vector<128xf32>
    %c7_166 = arith.constant 7 : index
    %332 = memref.load %arg6[%c7_166] : memref<8xf32, #tpu.memory_space<smem>>
    %cst_167 = arith.constant 0.000000e+00 : f32
    %333 = vector.broadcast %cst_167 : f32 to vector<128xf32>
    %334 = arith.maximumf %331, %333 : vector<128xf32>
    %335 = vector.broadcast %332 : f32 to vector<128xf32>
    %336 = arith.mulf %335, %334 : vector<128xf32>
    %337 = arith.addf %297, %336 : vector<128xf32>
    %338 = arith.negf %337 : vector<128xf32>
    %339 = math.exp %338 : vector<128xf32>
    %cst_168 = arith.constant 1.000000e+00 : f32
    %340 = vector.broadcast %cst_168 : f32 to vector<128xf32>
    %341 = arith.addf %340, %339 : vector<128xf32>
    %342 = arith.divf %340, %341 : vector<128xf32>
    %343 = arith.mulf %1, %342 : vector<128xf32>
    %c0_169 = arith.constant 0 : index
    %c0_170 = arith.constant 0 : index
    %c0_171 = arith.constant 0 : index
    %344 = vector.load %arg8[%c0_169, %c0_170, %c0_171] : memref<1x4x128xf32, #tpu.memory_space<vmem>>, vector<1x1x128xf32>
    %345 = vector.shape_cast %344 : vector<1x1x128xf32> to vector<128xf32>
    %346 = vector.shape_cast %343 : vector<128xf32> to vector<1x1x128xf32>
    tpu.vector_store %arg8[%c0_169, %c0_170, %c0_171], %346 {strides = array<i32>} : memref<1x4x128xf32, #tpu.memory_space<vmem>>, vector<1x1x128xf32>,
    %347 = arith.mulf %3, %342 : vector<128xf32>
    %c0_172 = arith.constant 0 : index
    %c1_173 = arith.constant 1 : index
    %c0_174 = arith.constant 0 : index
    %348 = vector.load %arg8[%c0_172, %c1_173, %c0_174] : memref<1x4x128xf32, #tpu.memory_space<vmem>>, vector<1x1x128xf32>
    %349 = vector.shape_cast %348 : vector<1x1x128xf32> to vector<128xf32>
    %350 = vector.shape_cast %347 : vector<128xf32> to vector<1x1x128xf32>
    tpu.vector_store %arg8[%c0_172, %c1_173, %c0_174], %350 {strides = array<i32>} : memref<1x4x128xf32, #tpu.memory_space<vmem>>, vector<1x1x128xf32>,
    %351 = arith.mulf %5, %342 : vector<128xf32>
    %c0_175 = arith.constant 0 : index
    %c2_176 = arith.constant 2 : index
    %c0_177 = arith.constant 0 : index
    %352 = vector.load %arg8[%c0_175, %c2_176, %c0_177] : memref<1x4x128xf32, #tpu.memory_space<vmem>>, vector<1x1x128xf32>
    %353 = vector.shape_cast %352 : vector<1x1x128xf32> to vector<128xf32>
    %354 = vector.shape_cast %351 : vector<128xf32> to vector<1x1x128xf32>
    tpu.vector_store %arg8[%c0_175, %c2_176, %c0_177], %354 {strides = array<i32>} : memref<1x4x128xf32, #tpu.memory_space<vmem>>, vector<1x1x128xf32>,
    %355 = arith.mulf %7, %342 : vector<128xf32>
    %c0_178 = arith.constant 0 : index
    %c3_179 = arith.constant 3 : index
    %c0_180 = arith.constant 0 : index
    %356 = vector.load %arg8[%c0_178, %c3_179, %c0_180] : memref<1x4x128xf32, #tpu.memory_space<vmem>>, vector<1x1x128xf32>
    %357 = vector.shape_cast %356 : vector<1x1x128xf32> to vector<128xf32>
    %358 = vector.shape_cast %355 : vector<128xf32> to vector<1x1x128xf32>
    tpu.vector_store %arg8[%c0_178, %c3_179, %c0_180], %358 {strides = array<i32>} : memref<1x4x128xf32, #tpu.memory_space<vmem>>, vector<1x1x128xf32>,
    return
  }
  func.func @transform_0(%arg0: i32, %arg1: i32) -> (i32, i32, i32) {
    %c0_i32 = arith.constant 0 : i32
    %c0_i32_0 = arith.constant 0 : i32
    return %arg0, %c0_i32, %arg1 : i32, i32, i32
  }
  func.func @transform_1(%arg0: i32, %arg1: i32) -> (i32, i32, i32) {
    %c0_i32 = arith.constant 0 : i32
    %c0_i32_0 = arith.constant 0 : i32
    return %arg0, %c0_i32, %arg1 : i32, i32, i32
  }
  func.func @transform_2(%arg0: i32, %arg1: i32) -> (i32, i32) {
    %c0_i32 = arith.constant 0 : i32
    %c0_i32_0 = arith.constant 0 : i32
    %c0_i32_1 = arith.constant 0 : i32
    return %c0_i32, %c0_i32_0 : i32, i32
  }
  func.func @transform_3(%arg0: i32, %arg1: i32) -> i32 {
    %c0_i32 = arith.constant 0 : i32
    %c0_i32_0 = arith.constant 0 : i32
    return %c0_i32 : i32
  }
  func.func @transform_4(%arg0: i32, %arg1: i32) -> i32 {
    %c0_i32 = arith.constant 0 : i32
    %c0_i32_0 = arith.constant 0 : i32
    return %c0_i32 : i32
  }
  func.func @transform_5(%arg0: i32, %arg1: i32) -> i32 {
    %c0_i32 = arith.constant 0 : i32
    %c0_i32_0 = arith.constant 0 : i32
    return %c0_i32 : i32
  }
  func.func @transform_6(%arg0: i32, %arg1: i32) -> (i32, i32, i32) {
    %c0_i32 = arith.constant 0 : i32
    %c0_i32_0 = arith.constant 0 : i32
    return %arg0, %c0_i32, %arg1 : i32, i32, i32
  }
}

</mosaic_0001>

<llo_original>
// kernel: attention_block.1
$region0: #{attention_block.1}
  #allocation0 [shape = 'u32[]', space=smem, size = 0x4, offset = 0x4, fixed_abs, tag = 'smem constant byte address 0x4 - core index']
  #allocation1 [shape = 'u32[144,128]{1,0:T(1,128)}', space=vmem, size = 0x12000, scoped, tag = 'internal scratch']
  #allocation2 [shape = 'f32[1]{0:T(128)S(6)}', space=smem, size = 0x200, scoped, tag = 'scoped memory for attention_block.1']
  %s0 = inlined_call_operand.vmem [shape: f32[2,4,256], index: 0, kind: input, shape index: {}]
  %s1 = inlined_call_operand.vmem [shape: f32[2,4,256], index: 1, kind: input, shape index: {}]
  %s2 = inlined_call_operand.vmem [shape: f32[8,8], index: 2, kind: input, shape index: {}]
  %s3 = inlined_call_operand.vmem [shape: f32[8], index: 3, kind: input, shape index: {}]
  %s4 = inlined_call_operand.vmem [shape: f32[8], index: 4, kind: input, shape index: {}]
  %s5 = inlined_call_operand.<no memory space> [shape: f32[1], index: 5, kind: input, shape index: {}]
  %s6 = inlined_call_operand.vmem [shape: f32[2,4,256], index: 6, kind: output, shape index: {}]
  %s7 = sld [smem:[#allocation0]]
  $region69: #{attention_block.1} parent=0
    _
  %s9 = ssub.s32 1, %s7
  %s10 = scalar_select 0, %s9, %s7
  %11 = sst [smem:[#allocation2]] %s5
  $region1: #{attention_block.1} parent=0
    #allocation3 [shape = 'u8[4096]{0}', space=smem, size = 0x1000, scoped, tag = 'input window, operand 2, single buffered']
    #allocation4 [shape = 's32[2]{0}', space=sflag, size = 0x8, scoped, tag = 'scoped memory for attention_block.1']
    #allocation5 [shape = 'u8[512]{0}', space=smem, size = 0x200, scoped, tag = 'input window, operand 3, single buffered']
    #allocation6 [shape = 's32[1]{0}', space=sflag, size = 0x4, scoped, tag = 'scoped memory for attention_block.1']
    #allocation7 [shape = 'u8[512]{0}', space=smem, size = 0x200, scoped, tag = 'input window, operand 4, single buffered']
    %12 = vsyncpa [#allocation4], 0
    %13 = vsyncpa [#allocation6], 0
    loop: start=0, step=1, limit=6
    $region2: #{attention_block.1} parent=1 // loop_pre_header
      _
    $region3: #{attention_block.1} parent=1 // loop_header
      %s15 = sphi 0, %s19
      %p16 = scmp.ge.s32.totalorder %s15, 6
      %s22 = sphi 0, %s34
      %s23 = sphi 0, %s30
      %s24 = sphi 0, %s22
      %s25 = sphi 0, %s23
      %s26 = sphi 0, %s24
      %s27 = sphi 0, %s25
      %s39 = sphi 0, %s41
      %s42 = sphi 0, %s39
      %s43 = sphi 0, %s42
      %s59 = sphi 0, %s43
      %s67 = sphi 0, %s69
      %s70 = sphi 0, %s67
      %s71 = sphi 0, %s70
      %s87 = sphi 0, %s71
      %s91 = sphi 0, %s91
      %s93 = sphi 0, %s91
      %s94 = sphi 0, %s93
      %s108 = sphi 0, %s94
      %s112 = sphi 0, %s112
      %s114 = sphi 0, %s112
      %s115 = sphi 0, %s114
      %s129 = sphi 0, %s115
      %s133 = sphi 0, %s133
      %s135 = sphi 0, %s133
      %s136 = sphi 0, %s135
      %s150 = sphi 0, %s136
      %s154 = sphi 0, %s154
      %s156 = sphi 0, %s154
      %s157 = sphi 0, %s156
      %s171 = sphi 0, %s157
      %s179 = sphi 0, %s181
      %s182 = sphi 0, %s179
      %s183 = sphi 0, %s182
      %s199 = sphi 0, %s183
    $region4: #{attention_block.1} parent=1 // loop_header_branch
      %18 = sbr.rel (%p16) target = $region8
    $region5: #{attention_block.1} parent=1 // loop_body
      %s20 = ssub.s32 %s15, 1
      %s21 = ssub.s32 %s15, 2
      %s28 = sadd.s32 1, %s23
      %p29 = scmp.ge.s32.totalorder %s28, 2
      %s30 = scalar_select %p29, 0, %s28
      %s31 = sadd.s32 1, %s22
      %s32 = scalar_select %p29, %s31, %s22
      %p33 = scmp.ge.s32.totalorder %s32, 2
      %s34 = scalar_select %p33, 0, %s32
      %s35 = ssub.s32 %s22, %s34
      %s36 = ssub.s32 %s23, %s30
      %s37 = sor.u32 %s35, %s36
      %p38 = scmp.eq.s32.totalorder %s37, 0
      %s40 = sadd.s32 %s39, 1
      %s41 = scalar_select %p38, %s39, %s40
      %p44 = pneg %p38
      %p45 = scmp.eq.s32.totalorder %s15, 3
      %p46 = por %p44, %p45
      %p47 = scmp.ne.s32.totalorder %s39, %s42
      %p48 = scmp.eq.s32.totalorder %s15, 0
      %p49 = por %p47, %p48
      %p50 = scmp.ne.s32.totalorder %s39, %s42
      %p51 = scmp.eq.s32.totalorder %s20, 3
      %p52 = por %p50, %p51
      %p53 = scmp.ne.s32.totalorder %s42, %s43
      %p54 = scmp.eq.s32.totalorder %s20, 0
      %p55 = por %p53, %p54
      %p56 = scmp.ne.s32.totalorder %s42, %s43
      %p57 = scmp.eq.s32.totalorder %s21, 3
      %p58 = por %p56, %p57
      %p60 = scmp.ne.s32.totalorder %s43, %s59
      %p61 = scmp.eq.s32.totalorder %s21, 0
      %p62 = por %p60, %p61
      %s63 = ssub.s32 %s22, %s34
      %s64 = ssub.s32 %s23, %s30
      %s65 = sor.u32 %s63, %s64
      %p66 = scmp.eq.s32.totalorder %s65, 0
      %s68 = sadd.s32 %s67, 1
      %s69 = scalar_select %p66, %s67, %s68
      %p72 = pneg %p66
      %p73 = scmp.eq.s32.totalorder %s15, 3
      %p74 = por %p72, %p73
      %p75 = scmp.ne.s32.totalorder %s67, %s70
      %p76 = scmp.eq.s32.totalorder %s15, 0
      %p77 = por %p75, %p76
      %p78 = scmp.ne.s32.totalorder %s67, %s70
      %p79 = scmp.eq.s32.totalorder %s20, 3
      %p80 = por %p78, %p79
      %p81 = scmp.ne.s32.totalorder %s70, %s71
      %p82 = scmp.eq.s32.totalorder %s20, 0
      %p83 = por %p81, %p82
      %p84 = scmp.ne.s32.totalorder %s70, %s71
      %p85 = scmp.eq.s32.totalorder %s21, 3
      %p86 = por %p84, %p85
      %p88 = scmp.ne.s32.totalorder %s71, %s87
      %p89 = scmp.eq.s32.totalorder %s21, 0
      %p90 = por %p88, %p89
      %s92 = sadd.s32 %s91, 1
      %p95 = scmp.eq.s32.totalorder %s15, 3
      %p96 = scmp.ne.s32.totalorder %s91, %s93
      %p97 = scmp.eq.s32.totalorder %s15, 0
      %p98 = por %p96, %p97
      %p99 = scmp.ne.s32.totalorder %s91, %s93
      %p100 = scmp.eq.s32.totalorder %s20, 3
      %p101 = por %p99, %p100
      %p102 = scmp.ne.s32.totalorder %s93, %s94
      %p103 = scmp.eq.s32.totalorder %s20, 0
      %p104 = por %p102, %p103
      %p105 = scmp.ne.s32.totalorder %s93, %s94
      %p106 = scmp.eq.s32.totalorder %s21, 3
      %p107 = por %p105, %p106
      %p109 = scmp.ne.s32.totalorder %s94, %s108
      %p110 = scmp.eq.s32.totalorder %s21, 0
      %p111 = por %p109, %p110
      %s113 = sadd.s32 %s112, 1
      %p116 = scmp.eq.s32.totalorder %s15, 3
      %p117 = scmp.ne.s32.totalorder %s112, %s114
      %p118 = scmp.eq.s32.totalorder %s15, 0
      %p119 = por %p117, %p118
      %p120 = scmp.ne.s32.totalorder %s112, %s114
      %p121 = scmp.eq.s32.totalorder %s20, 3
      %p122 = por %p120, %p121
      %p123 = scmp.ne.s32.totalorder %s114, %s115
      %p124 = scmp.eq.s32.totalorder %s20, 0
      %p125 = por %p123, %p124
      %p126 = scmp.ne.s32.totalorder %s114, %s115
      %p127 = scmp.eq.s32.totalorder %s21, 3
      %p128 = por %p126, %p127
      %p130 = scmp.ne.s32.totalorder %s115, %s129
      %p131 = scmp.eq.s32.totalorder %s21, 0
      %p132 = por %p130, %p131
      %s134 = sadd.s32 %s133, 1
      %p137 = scmp.eq.s32.totalorder %s15, 3
      %p138 = scmp.ne.s32.totalorder %s133, %s135
      %p139 = scmp.eq.s32.totalorder %s15, 0
      %p140 = por %p138, %p139
      %p141 = scmp.ne.s32.totalorder %s133, %s135
      %p142 = scmp.eq.s32.totalorder %s20, 3
      %p143 = por %p141, %p142
      %p144 = scmp.ne.s32.totalorder %s135, %s136
      %p145 = scmp.eq.s32.totalorder %s20, 0
      %p146 = por %p144, %p145
      %p147 = scmp.ne.s32.totalorder %s135, %s136
      %p148 = scmp.eq.s32.totalorder %s21, 3
      %p149 = por %p147, %p148
      %p151 = scmp.ne.s32.totalorder %s136, %s150
      %p152 = scmp.eq.s32.totalorder %s21, 0
      %p153 = por %p151, %p152
      %s155 = sadd.s32 %s154, 1
      %p158 = scmp.eq.s32.totalorder %s15, 3
      %p159 = scmp.ne.s32.totalorder %s154, %s156
      %p160 = scmp.eq.s32.totalorder %s15, 0
      %p161 = por %p159, %p160
      %p162 = scmp.ne.s32.totalorder %s154, %s156
      %p163 = scmp.eq.s32.totalorder %s20, 3
      %p164 = por %p162, %p163
      %p165 = scmp.ne.s32.totalorder %s156, %s157
      %p166 = scmp.eq.s32.totalorder %s20, 0
      %p167 = por %p165, %p166
      %p168 = scmp.ne.s32.totalorder %s156, %s157
      %p169 = scmp.eq.s32.totalorder %s21, 3
      %p170 = por %p168, %p169
      %p172 = scmp.ne.s32.totalorder %s157, %s171
      %p173 = scmp.eq.s32.totalorder %s21, 0
      %p174 = por %p172, %p173
      %s175 = ssub.s32 %s22, %s34
      %s176 = ssub.s32 %s23, %s30
      %s177 = sor.u32 %s175, %s176
      %p178 = scmp.eq.s32.totalorder %s177, 0
      %s180 = sadd.s32 %s179, 1
      %s181 = scalar_select %p178, %s179, %s180
      %p184 = pneg %p178
      %p185 = scmp.eq.s32.totalorder %s15, 3
      %p186 = por %p184, %p185
      %p187 = scmp.ne.s32.totalorder %s179, %s182
      %p188 = scmp.eq.s32.totalorder %s15, 0
      %p189 = por %p187, %p188
      %p190 = scmp.ne.s32.totalorder %s179, %s182
      %p191 = scmp.eq.s32.totalorder %s20, 3
      %p192 = por %p190, %p191
      %p193 = scmp.ne.s32.totalorder %s182, %s183
      %p194 = scmp.eq.s32.totalorder %s20, 0
      %p195 = por %p193, %p194
      %p196 = scmp.ne.s32.totalorder %s182, %s183
      %p197 = scmp.eq.s32.totalorder %s21, 3
      %p198 = por %p196, %p197
      %p200 = scmp.ne.s32.totalorder %s183, %s199
      %p201 = scmp.eq.s32.totalorder %s21, 0
      %p202 = por %p200, %p201
      %p203 = scmp.le.s32.totalorder 1, %s15
      %p204 = scmp.lt.s32.totalorder %s15, 5
      %p205 = pnand %p203, %p204
      %p206 = pneg %p205
      // Predicated region
      $region9: #{attention_block.1} parent=5 // pred_check
        _
      $region10: #{attention_block.1} parent=5 // pred_check_branch
        %208 = sbr.rel (%p205) target = $region12
      $region11: #{attention_block.1} parent=5 // pred_region
        %s209 = ssub.s32 %s15, 1
        // Predicated region
        $region13: #{attention_block.1} parent=11 // pred_check
          %p210 = pneg %p104
        $region14: #{attention_block.1} parent=11 // pred_check_branch
          %212 = sbr.rel (%p210) target = $region16
        $region15: #{attention_block.1} parent=11 // pred_region
          %s214 = ssub.s32 128, 128
          %215 = vsyncadd [#allocation4], %s214
          %s217 = sshll.u32 %s2, 4
          %s218 = int_to_ptr.vmem [resolvable:$true] %s217
          %220 = dma.vmem_to_smem %s218, 128, [#allocation3], [#allocation4]
        $region16: #{attention_block.1} parent=11 // pred_fallthru
          _
        // Predicated region
        $region17: #{attention_block.1} parent=11 // pred_check
          %p221 = pneg %p125
        $region18: #{attention_block.1} parent=11 // pred_check_branch
          %223 = sbr.rel (%p221) target = $region20
        $region19: #{attention_block.1} parent=11 // pred_region
          %s225 = ssub.s32 16, 16
          %226 = vsyncadd [#allocation6], %s225
          %s228 = sshll.u32 %s3, 4
          %s229 = int_to_ptr.vmem [resolvable:$true] %s228
          %231 = dma.vmem_to_smem %s229, 16, [#allocation5], [#allocation6]
        $region20: #{attention_block.1} parent=11 // pred_fallthru
          _
        // Predicated region
        $region21: #{attention_block.1} parent=11 // pred_check
          %p232 = pneg %p146
        $region22: #{attention_block.1} parent=11 // pred_check_branch
          %234 = sbr.rel (%p232) target = $region24
        $region23: #{attention_block.1} parent=11 // pred_region
          %s236 = ssub.s32 16, 16
          %237 = vsyncadd [#allocation6], %s236
          %s239 = sshll.u32 %s4, 4
          %s240 = int_to_ptr.vmem [resolvable:$true] %s239
          %242 = dma.vmem_to_smem %s240, 16, [#allocation7], [#allocation6]
        $region24: #{attention_block.1} parent=11 // pred_fallthru
          _
        // Predicated region
        $region25: #{attention_block.1} parent=11 // pred_check
          %p243 = pneg %p167
        $region26: #{attention_block.1} parent=11 // pred_check_branch
          %245 = sbr.rel (%p243) target = $region28
        $region27: #{attention_block.1} parent=11 // pred_region
          _
        $region28: #{attention_block.1} parent=11 // pred_fallthru
          _
      $region12: #{attention_block.1} parent=5 // pred_fallthru
        _
      %p246 = scmp.lt.s32.totalorder %s15, 4
      // Predicated region
      $region29: #{attention_block.1} parent=5 // pred_check
        %p247 = pneg %p246
      $region30: #{attention_block.1} parent=5 // pred_check_branch
        %249 = sbr.rel (%p247) target = $region32
      $region31: #{attention_block.1} parent=5 // pred_region
        // Predicated region
        $region33: #{attention_block.1} parent=31 // pred_check
          %p250 = pneg %p49
        $region34: #{attention_block.1} parent=31 // pred_check_branch
          %252 = sbr.rel (%p250) target = $region36
        $region35: #{attention_block.1} parent=31 // pred_region
          %p253 = scmp.lt.s32.totalorder %s22, 1
          %s254 = scalar_select %p253, %s22, 1
          %p255 = scmp.lt.s32.totalorder %s23, 1
          %s256 = scalar_select %p255, %s23, 1
          %s257 = smul.addr %s254, 2
          %s258 = sadd.s32 %s256, %s257
          %s259 = smul.addr %s258, 4
          %s260 = scalar_lea.vmem %s0, %s259
        $region36: #{attention_block.1} parent=31 // pred_fallthru
          _
        // Predicated region
        $region37: #{attention_block.1} parent=31 // pred_check
          %p261 = pneg %p77
        $region38: #{attention_block.1} parent=31 // pred_check_branch
          %263 = sbr.rel (%p261) target = $region40
        $region39: #{attention_block.1} parent=31 // pred_region
          %p264 = scmp.lt.s32.totalorder %s22, 1
          %s265 = scalar_select %p264, %s22, 1
          %p266 = scmp.lt.s32.totalorder %s23, 1
          %s267 = scalar_select %p266, %s23, 1
          %s268 = smul.addr %s265, 2
          %s269 = sadd.s32 %s267, %s268
          %s270 = smul.addr %s269, 4
          %s271 = scalar_lea.vmem %s1, %s270
        $region40: #{attention_block.1} parent=31 // pred_fallthru
          _
      $region32: #{attention_block.1} parent=5 // pred_fallthru
        _
      %p272 = scmp.le.s32.totalorder 1, %s15
      %p273 = scmp.lt.s32.totalorder %s15, 5
      %p274 = pnand %p272, %p273
      %p275 = pneg %p274
      // Predicated region
      $region41: #{attention_block.1} parent=5 // pred_check
        _
      $region42: #{attention_block.1} parent=5 // pred_check_branch
        %277 = sbr.rel (%p274) target = $region44
      $region43: #{attention_block.1} parent=5 // pred_region
        %s278 = ssub.s32 %s15, 1
        // Predicated region
        $region45: #{attention_block.1} parent=43 // pred_check
          %p279 = pneg %p104
        $region46: #{attention_block.1} parent=43 // pred_check_branch
          %281 = sbr.rel (%p279) target = $region48
        $region47: #{attention_block.1} parent=43 // pred_region
          %282 = dma.done [#allocation4], 128
        $region48: #{attention_block.1} parent=43 // pred_fallthru
          _
        // Predicated region
        $region49: #{attention_block.1} parent=43 // pred_check
          %p283 = pneg %p125
        $region50: #{attention_block.1} parent=43 // pred_check_branch
          %285 = sbr.rel (%p283) target = $region52
        $region51: #{attention_block.1} parent=43 // pred_region
          %286 = dma.done [#allocation6], 16
        $region52: #{attention_block.1} parent=43 // pred_fallthru
          _
        // Predicated region
        $region53: #{attention_block.1} parent=43 // pred_check
          %p287 = pneg %p146
        $region54: #{attention_block.1} parent=43 // pred_check_branch
          %289 = sbr.rel (%p287) target = $region56
        $region55: #{attention_block.1} parent=43 // pred_region
          %290 = dma.done [#allocation6], 16
        $region56: #{attention_block.1} parent=43 // pred_fallthru
          _
        %291 = sfence
        %p292 = scmp.lt.s32.totalorder %s24, 1
        %s293 = scalar_select %p292, %s24, 1
        %p294 = scmp.lt.s32.totalorder %s25, 1
        %s295 = scalar_select %p294, %s25, 1
        %s296 = smul.addr %s293, 2
        %s297 = sadd.s32 %s295, %s296
        %s298 = smul.addr %s297, 4
        %s299 = scalar_lea.vmem %s0, %s298
        %p300 = pneg %p55
        %p301 = pneg %p52
        %p302 = scmp.lt.s32.totalorder %s24, 1
        %s303 = scalar_select %p302, %s24, 1
        %p304 = scmp.lt.s32.totalorder %s25, 1
        %s305 = scalar_select %p304, %s25, 1
        %s306 = smul.addr %s303, 2
        %s307 = sadd.s32 %s305, %s306
        %s308 = smul.addr %s307, 4
        %s309 = scalar_lea.vmem %s1, %s308
        %p310 = pneg %p83
        %p311 = pneg %p80
        %p312 = pneg %p104
        %p313 = pneg %p101
        %p314 = pneg %p125
        %p315 = pneg %p122
        %p316 = pneg %p146
        %p317 = pneg %p143
        %p318 = pneg %p167
        %p319 = pneg %p164
        %p320 = pneg %p195
        %p321 = pneg %p192
        %p322 = scmp.lt.s32.totalorder %s24, 1
        %s323 = scalar_select %p322, %s24, 1
        %p324 = scmp.lt.s32.totalorder %s25, 1
        %s325 = scalar_select %p324, %s25, 1
        %s326 = smul.addr %s323, 2
        %s327 = sadd.s32 %s325, %s326
        %s328 = smul.addr %s327, 4
        %s329 = scalar_lea.vmem %s6, %s328
        %p330 = scmp.lt.s32.totalorder %s24, 1
        %s331 = scalar_select %p330, %s24, 1
        %p332 = scmp.lt.s32.totalorder %s25, 1
        %s333 = scalar_select %p332, %s25, 1
        %s334 = smul.addr %s331, 2
        %s335 = sadd.s32 %s333, %s334
        %s336 = smul.addr %s335, 4
        %s337 = scalar_lea.vmem %s0, %s336
        %p338 = scmp.lt.s32.totalorder %s24, 1
        %s339 = scalar_select %p338, %s24, 1
        %p340 = scmp.lt.s32.totalorder %s25, 1
        %s341 = scalar_select %p340, %s25, 1
        %s342 = smul.addr %s339, 2
        %s343 = sadd.s32 %s341, %s342
        %s344 = smul.addr %s343, 4
        %s345 = scalar_lea.vmem %s1, %s344
        %p346 = scmp.lt.s32.totalorder %s24, 1
        %s347 = scalar_select %p346, %s24, 1
        %p348 = scmp.lt.s32.totalorder %s25, 1
        %s349 = scalar_select %p348, %s25, 1
        %s350 = smul.addr %s347, 2
        %s351 = sadd.s32 %s349, %s350
        %s352 = smul.addr %s351, 4
        %s353 = scalar_lea.vmem %s6, %s352
        %v354 = vld [vmem:[%s345] sm:$0x1]
        %v355 = vld [vmem:[%s345 + $0x1] sm:$0x1]
        %v356 = vld [vmem:[%s345 + $0x2] sm:$0x1]
        %v357 = vld [vmem:[%s345 + $0x3] sm:$0x1]
        %v358 = vld [vmem:[%s337] sm:$0x1]
        %v359 = vld [vmem:[%s337 + $0x1] sm:$0x1]
        %v360 = vld [vmem:[%s337 + $0x2] sm:$0x1]
        %v361 = vld [vmem:[%s337 + $0x3] sm:$0x1]
        %s362 = sld [smem:[#allocation2]]
        %s363 = sld [smem:[#allocation5]]
        %s364 = sld [smem:[#allocation3]]
        %v365 = vstv %s364
        %v366 = vmul.f32 %v365, %v358
        %v367 = vstv %s363
        %v368 = vadd.f32 %v367, %v366
        %s369 = sld [smem:[#allocation3 + $0x1]]
        %v370 = vstv %s369
        %v371 = vmul.f32 %v370, %v359
        %v372 = vadd.f32 %v368, %v371
        %s373 = sld [smem:[#allocation3 + $0x2]]
        %v374 = vstv %s373
        %v375 = vmul.f32 %v374, %v360
        %v376 = vadd.f32 %v372, %v375
        %s377 = sld [smem:[#allocation3 + $0x3]]
        %v378 = vstv %s377
        %v379 = vmul.f32 %v378, %v361
        %v380 = vadd.f32 %v376, %v379
        %s381 = sld [smem:[#allocation3 + $0x4]]
        %v382 = vstv %s381
        %v383 = vmul.f32 %v382, %v354
        %v384 = vadd.f32 %v380, %v383
        %s385 = sld [smem:[#allocation3 + $0x5]]
        %v386 = vstv %s385
        %v387 = vmul.f32 %v386, %v355
        %v388 = vadd.f32 %v384, %v387
        %s389 = sld [smem:[#allocation3 + $0x6]]
        %v390 = vstv %s389
        %v391 = vmul.f32 %v390, %v356
        %v392 = vadd.f32 %v388, %v391
        %s393 = sld [smem:[#allocation3 + $0x7]]
        %v394 = vstv %s393
        %v395 = vmul.f32 %v394, %v357
        %v396 = vadd.f32 %v392, %v395
        %s397 = sld [smem:[#allocation7]]
        %v398 = vmax.f32 %v396, 0.0
        %v399 = vstv %s397
        %v400 = vmul.f32 %v399, %v398
        %v401 = vstv %s362
        %v402 = vadd.f32 %v401, %v400
        %s403 = sld [smem:[#allocation5 + $0x1]]
        %s404 = sld [smem:[#allocation3 + $0x80]]
        %v405 = vstv %s404
        %v406 = vmul.f32 %v405, %v358
        %v407 = vstv %s403
        %v408 = vadd.f32 %v407, %v406
        %s409 = sld [smem:[#allocation3 + $0x81]]
        %v410 = vstv %s409
        %v411 = vmul.f32 %v410, %v359
        %v412 = vadd.f32 %v408, %v411
        %s413 = sld [smem:[#allocation3 + $0x82]]
        %v414 = vstv %s413
        %v415 = vmul.f32 %v414, %v360
        %v416 = vadd.f32 %v412, %v415
        %s417 = sld [smem:[#allocation3 + $0x83]]
        %v418 = vstv %s417
        %v419 = vmul.f32 %v418, %v361
        %v420 = vadd.f32 %v416, %v419
        %s421 = sld [smem:[#allocation3 + $0x84]]
        %v422 = vstv %s421
        %v423 = vmul.f32 %v422, %v354
        %v424 = vadd.f32 %v420, %v423
        %s425 = sld [smem:[#allocation3 + $0x85]]
        %v426 = vstv %s425
        %v427 = vmul.f32 %v426, %v355
        %v428 = vadd.f32 %v424, %v427
        %s429 = sld [smem:[#allocation3 + $0x86]]
        %v430 = vstv %s429
        %v431 = vmul.f32 %v430, %v356
        %v432 = vadd.f32 %v428, %v431
        %s433 = sld [smem:[#allocation3 + $0x87]]
        %v434 = vstv %s433
        %v435 = vmul.f32 %v434, %v357
        %v436 = vadd.f32 %v432, %v435
        %s437 = sld [smem:[#allocation7 + $0x1]]
        %v438 = vmax.f32 %v436, 0.0
        %v439 = vstv %s437
        %v440 = vmul.f32 %v439, %v438
        %v441 = vadd.f32 %v402, %v440
        %s442 = sld [smem:[#allocation5 + $0x2]]
        %s443 = sld [smem:[#allocation3 + $0x100]]
        %v444 = vstv %s443
        %v445 = vmul.f32 %v444, %v358
        %v446 = vstv %s442
        %v447 = vadd.f32 %v446, %v445
        %s448 = sld [smem:[#allocation3 + $0x101]]
        %v449 = vstv %s448
        %v450 = vmul.f32 %v449, %v359
        %v451 = vadd.f32 %v447, %v450
        %s452 = sld [smem:[#allocation3 + $0x102]]
        %v453 = vstv %s452
        %v454 = vmul.f32 %v453, %v360
        %v455 = vadd.f32 %v451, %v454
        %s456 = sld [smem:[#allocation3 + $0x103]]
        %v457 = vstv %s456
        %v458 = vmul.f32 %v457, %v361
        %v459 = vadd.f32 %v455, %v458
        %s460 = sld [smem:[#allocation3 + $0x104]]
        %v461 = vstv %s460
        %v462 = vmul.f32 %v461, %v354
        %v463 = vadd.f32 %v459, %v462
        %s464 = sld [smem:[#allocation3 + $0x105]]
        %v465 = vstv %s464
        %v466 = vmul.f32 %v465, %v355
        %v467 = vadd.f32 %v463, %v466
        %s468 = sld [smem:[#allocation3 + $0x106]]
        %v469 = vstv %s468
        %v470 = vmul.f32 %v469, %v356
        %v471 = vadd.f32 %v467, %v470
        %s472 = sld [smem:[#allocation3 + $0x107]]
        %v473 = vstv %s472
        %v474 = vmul.f32 %v473, %v357
        %v475 = vadd.f32 %v471, %v474
        %s476 = sld [smem:[#allocation7 + $0x2]]
        %v477 = vmax.f32 %v475, 0.0
        %v478 = vstv %s476
        %v479 = vmul.f32 %v478, %v477
        %v480 = vadd.f32 %v441, %v479
        %s481 = sld [smem:[#allocation5 + $0x3]]
        %s482 = sld [smem:[#allocation3 + $0x180]]
        %v483 = vstv %s482
        %v484 = vmul.f32 %v483, %v358
        %v485 = vstv %s481
        %v486 = vadd.f32 %v485, %v484
        %s487 = sld [smem:[#allocation3 + $0x181]]
        %v488 = vstv %s487
        %v489 = vmul.f32 %v488, %v359
        %v490 = vadd.f32 %v486, %v489
        %s491 = sld [smem:[#allocation3 + $0x182]]
        %v492 = vstv %s491
        %v493 = vmul.f32 %v492, %v360
        %v494 = vadd.f32 %v490, %v493
        %s495 = sld [smem:[#allocation3 + $0x183]]
        %v496 = vstv %s495
        %v497 = vmul.f32 %v496, %v361
        %v498 = vadd.f32 %v494, %v497
        %s499 = sld [smem:[#allocation3 + $0x184]]
        %v500 = vstv %s499
        %v501 = vmul.f32 %v500, %v354
        %v502 = vadd.f32 %v498, %v501
        %s503 = sld [smem:[#allocation3 + $0x185]]
        %v504 = vstv %s503
        %v505 = vmul.f32 %v504, %v355
        %v506 = vadd.f32 %v502, %v505
        %s507 = sld [smem:[#allocation3 + $0x186]]
        %v508 = vstv %s507
        %v509 = vmul.f32 %v508, %v356
        %v510 = vadd.f32 %v506, %v509
        %s511 = sld [smem:[#allocation3 + $0x187]]
        %v512 = vstv %s511
        %v513 = vmul.f32 %v512, %v357
        %v514 = vadd.f32 %v510, %v513
        %s515 = sld [smem:[#allocation7 + $0x3]]
        %v516 = vmax.f32 %v514, 0.0
        %v517 = vstv %s515
        %v518 = vmul.f32 %v517, %v516
        %v519 = vadd.f32 %v480, %v518
        %s520 = sld [smem:[#allocation5 + $0x4]]
        %s521 = sld [smem:[#allocation3 + $0x200]]
        %v522 = vstv %s521
        %v523 = vmul.f32 %v522, %v358
        %v524 = vstv %s520
        %v525 = vadd.f32 %v524, %v523
        %s526 = sld [smem:[#allocation3 + $0x201]]
        %v527 = vstv %s526
        %v528 = vmul.f32 %v527, %v359
        %v529 = vadd.f32 %v525, %v528
        %s530 = sld [smem:[#allocation3 + $0x202]]
        %v531 = vstv %s530
        %v532 = vmul.f32 %v531, %v360
        %v533 = vadd.f32 %v529, %v532
        %s534 = sld [smem:[#allocation3 + $0x203]]
        %v535 = vstv %s534
        %v536 = vmul.f32 %v535, %v361
        %v537 = vadd.f32 %v533, %v536
        %s538 = sld [smem:[#allocation3 + $0x204]]
        %v539 = vstv %s538
        %v540 = vmul.f32 %v539, %v354
        %v541 = vadd.f32 %v537, %v540
        %s542 = sld [smem:[#allocation3 + $0x205]]
        %v543 = vstv %s542
        %v544 = vmul.f32 %v543, %v355
        %v545 = vadd.f32 %v541, %v544
        %s546 = sld [smem:[#allocation3 + $0x206]]
        %v547 = vstv %s546
        %v548 = vmul.f32 %v547, %v356
        %v549 = vadd.f32 %v545, %v548
        %s550 = sld [smem:[#allocation3 + $0x207]]
        %v551 = vstv %s550
        %v552 = vmul.f32 %v551, %v357
        %v553 = vadd.f32 %v549, %v552
        %s554 = sld [smem:[#allocation7 + $0x4]]
        %v555 = vmax.f32 %v553, 0.0
        %v556 = vstv %s554
        %v557 = vmul.f32 %v556, %v555
        %v558 = vadd.f32 %v519, %v557
        %s559 = sld [smem:[#allocation5 + $0x5]]
        %s560 = sld [smem:[#allocation3 + $0x280]]
        %v561 = vstv %s560
        %v562 = vmul.f32 %v561, %v358
        %v563 = vstv %s559
        %v564 = vadd.f32 %v563, %v562
        %s565 = sld [smem:[#allocation3 + $0x281]]
        %v566 = vstv %s565
        %v567 = vmul.f32 %v566, %v359
        %v568 = vadd.f32 %v564, %v567
        %s569 = sld [smem:[#allocation3 + $0x282]]
        %v570 = vstv %s569
        %v571 = vmul.f32 %v570, %v360
        %v572 = vadd.f32 %v568, %v571
        %s573 = sld [smem:[#allocation3 + $0x283]]
        %v574 = vstv %s573
        %v575 = vmul.f32 %v574, %v361
        %v576 = vadd.f32 %v572, %v575
        %s577 = sld [smem:[#allocation3 + $0x284]]
        %v578 = vstv %s577
        %v579 = vmul.f32 %v578, %v354
        %v580 = vadd.f32 %v576, %v579
        %s581 = sld [smem:[#allocation3 + $0x285]]
        %v582 = vstv %s581
        %v583 = vmul.f32 %v582, %v355
        %v584 = vadd.f32 %v580, %v583
        %s585 = sld [smem:[#allocation3 + $0x286]]
        %v586 = vstv %s585
        %v587 = vmul.f32 %v586, %v356
        %v588 = vadd.f32 %v584, %v587
        %s589 = sld [smem:[#allocation3 + $0x287]]
        %v590 = vstv %s589
        %v591 = vmul.f32 %v590, %v357
        %v592 = vadd.f32 %v588, %v591
        %s593 = sld [smem:[#allocation7 + $0x5]]
        %v594 = vmax.f32 %v592, 0.0
        %v595 = vstv %s593
        %v596 = vmul.f32 %v595, %v594
        %v597 = vadd.f32 %v558, %v596
        %s598 = sld [smem:[#allocation5 + $0x6]]
        %s599 = sld [smem:[#allocation3 + $0x300]]
        %v600 = vstv %s599
        %v601 = vmul.f32 %v600, %v358
        %v602 = vstv %s598
        %v603 = vadd.f32 %v602, %v601
        %s604 = sld [smem:[#allocation3 + $0x301]]
        %v605 = vstv %s604
        %v606 = vmul.f32 %v605, %v359
        %v607 = vadd.f32 %v603, %v606
        %s608 = sld [smem:[#allocation3 + $0x302]]
        %v609 = vstv %s608
        %v610 = vmul.f32 %v609, %v360
        %v611 = vadd.f32 %v607, %v610
        %s612 = sld [smem:[#allocation3 + $0x303]]
        %v613 = vstv %s612
        %v614 = vmul.f32 %v613, %v361
        %v615 = vadd.f32 %v611, %v614
        %s616 = sld [smem:[#allocation3 + $0x304]]
        %v617 = vstv %s616
        %v618 = vmul.f32 %v617, %v354
        %v619 = vadd.f32 %v615, %v618
        %s620 = sld [smem:[#allocation3 + $0x305]]
        %v621 = vstv %s620
        %v622 = vmul.f32 %v621, %v355
        %v623 = vadd.f32 %v619, %v622
        %s624 = sld [smem:[#allocation3 + $0x306]]
        %v625 = vstv %s624
        %v626 = vmul.f32 %v625, %v356
        %v627 = vadd.f32 %v623, %v626
        %s628 = sld [smem:[#allocation3 + $0x307]]
        %v629 = vstv %s628
        %v630 = vmul.f32 %v629, %v357
        %v631 = vadd.f32 %v627, %v630
        %s632 = sld [smem:[#allocation7 + $0x6]]
        %v633 = vmax.f32 %v631, 0.0
        %v634 = vstv %s632
        %v635 = vmul.f32 %v634, %v633
        %v636 = vadd.f32 %v597, %v635
        %s637 = sld [smem:[#allocation5 + $0x7]]
        %s638 = sld [smem:[#allocation3 + $0x380]]
        %v639 = vstv %s638
        %v640 = vmul.f32 %v639, %v358
        %v641 = vstv %s637
        %v642 = vadd.f32 %v641, %v640
        %s643 = sld [smem:[#allocation3 + $0x381]]
        %v644 = vstv %s643
        %v645 = vmul.f32 %v644, %v359
        %v646 = vadd.f32 %v642, %v645
        %s647 = sld [smem:[#allocation3 + $0x382]]
        %v648 = vstv %s647
        %v649 = vmul.f32 %v648, %v360
        %v650 = vadd.f32 %v646, %v649
        %s651 = sld [smem:[#allocation3 + $0x383]]
        %v652 = vstv %s651
        %v653 = vmul.f32 %v652, %v361
        %v654 = vadd.f32 %v650, %v653
        %s655 = sld [smem:[#allocation3 + $0x384]]
        %v656 = vstv %s655
        %v657 = vmul.f32 %v656, %v354
        %v658 = vadd.f32 %v654, %v657
        %s659 = sld [smem:[#allocation3 + $0x385]]
        %v660 = vstv %s659
        %v661 = vmul.f32 %v660, %v355
        %v662 = vadd.f32 %v658, %v661
        %s663 = sld [smem:[#allocation3 + $0x386]]
        %v664 = vstv %s663
        %v665 = vmul.f32 %v664, %v356
        %v666 = vadd.f32 %v662, %v665
        %s667 = sld [smem:[#allocation3 + $0x387]]
        %v668 = vstv %s667
        %v669 = vmul.f32 %v668, %v357
        %v670 = vadd.f32 %v666, %v669
        %s671 = sld [smem:[#allocation7 + $0x7]]
        %v672 = vmax.f32 %v670, 0.0
        %v673 = vstv %s671
        %v674 = vmul.f32 %v673, %v672
        %v675 = vadd.f32 %v636, %v674
        %v676 = vxor.u32 %v675, 2147483648
        %v677 = vmul.f32 %v676, 1.442695
        %v678 = vpow.pop %v677
        %v679 = vadd.f32 %v678, 1.0
        %v680 = vrcp.pop %v679
        %v681 = vmul.f32 1.0, %v680
        %v682 = vmul.f32 %v354, %v681
        %683 = vst [vmem:[%s353] sm:$0x1] %v682
        %v684 = vmul.f32 %v355, %v681
        %685 = vst [vmem:[%s353 + $0x1] sm:$0x1] %v684
        %v686 = vmul.f32 %v356, %v681
        %687 = vst [vmem:[%s353 + $0x2] sm:$0x1] %v686
        %v688 = vmul.f32 %v357, %v681
        %689 = vst [vmem:[%s353 + $0x3] sm:$0x1] %v688
        %p690 = scmp.lt.s32.totalorder %s24, 1
        %s691 = scalar_select %p690, %s24, 1
        %p692 = scmp.lt.s32.totalorder %s25, 1
        %s693 = scalar_select %p692, %s25, 1
        %s694 = smul.addr %s691, 2
        %s695 = sadd.s32 %s693, %s694
        %s696 = smul.addr %s695, 4
        %s697 = scalar_lea.vmem %s6, %s696
        // Predicated region
        $region57: #{attention_block.1} parent=43 // pred_check
          %p698 = pneg %p192
        $region58: #{attention_block.1} parent=43 // pred_check_branch
          %700 = sbr.rel (%p698) target = $region60
        $region59: #{attention_block.1} parent=43 // pred_region
          _
        $region60: #{attention_block.1} parent=43 // pred_fallthru
          _
      $region44: #{attention_block.1} parent=5 // pred_fallthru
        _
      %p701 = scmp.le.s32.totalorder 2, %s15
      // Predicated region
      $region61: #{attention_block.1} parent=5 // pred_check
        %p702 = pneg %p701
      $region62: #{attention_block.1} parent=5 // pred_check_branch
        %704 = sbr.rel (%p702) target = $region64
      $region63: #{attention_block.1} parent=5 // pred_region
        %s705 = ssub.s32 %s15, 2
        // Predicated region
        $region65: #{attention_block.1} parent=63 // pred_check
          %p706 = pneg %p198
        $region66: #{attention_block.1} parent=63 // pred_check_branch
          %708 = sbr.rel (%p706) target = $region68
        $region67: #{attention_block.1} parent=63 // pred_region
          %p709 = scmp.lt.s32.totalorder %s26, 1
          %s710 = scalar_select %p709, %s26, 1
          %p711 = scmp.lt.s32.totalorder %s27, 1
          %s712 = scalar_select %p711, %s27, 1
          %s713 = smul.addr %s710, 2
          %s714 = sadd.s32 %s712, %s713
          %s715 = smul.addr %s714, 4
          %s716 = scalar_lea.vmem %s6, %s715
        $region68: #{attention_block.1} parent=63 // pred_fallthru
          _
      $region64: #{attention_block.1} parent=5 // pred_fallthru
        _
    $region6: #{attention_block.1} parent=1 // loop_footer
      %s19 = sadd.s32 1, %s15
    $region7: #{attention_block.1} parent=1 // loop_footer_branch
      %14 = sbr.rel target = $region3
    $region8: #{attention_block.1} parent=1 // loop_exit
      _
    %717 = vsyncpa [#allocation4], 1
    %s718 = scalar_lea.sflag [#allocation4], 1
    %719 = vsyncpa %s718, 1
    %720 = vsyncpa [#allocation6], 1

</llo_original>
